<compile_context>
chip_gen: v5e
topology: v5e:2x2
jax: 0.10.0
libtpu: 0.0.40
codegen_flags: <defaults>
</compile_context>

<pallas_src>
import numpy as np
import jax
import jax.numpy as jnp
from jax.experimental import pallas as pl
from jax.experimental.pallas import tpu as pltpu


def _round_up(x, m):
    return (x + m - 1) // m * m


def conve_score_kernel(x_ref, cmat_ref, cbias_ref, fcw_ref, fcb_ref,
                       e2t_ref, b_ref, out_ref):
    """Fused ConvE scorer for one (batch-tile, entity-tile) grid cell.

    x_ref    : (TILE_B, H*W)     f32   flattened [e1_2d ; r_2d] image
    cmat_ref : (H*W, FEAT)       f32   3x3 valid conv as im2col matmul weights
    cbias_ref: (1, FEAT)         f32   conv bias broadcast over (c, i, j) positions
    fcw_ref  : (FEAT, HID)       bf16  torch fc.weight.T
    fcb_ref  : (1, HID)          f32
    e2t_ref  : (HID, TILE_E)     bf16  entity_embeddings.T tile
    b_ref    : (1, TILE_E)       f32   score bias tile
    out_ref  : (TILE_B, TILE_E)  f32
    """
    x = x_ref[...]
    # conv3x3 (valid, single input channel) + ReLU, as a single MXU matmul.
    feat = jnp.maximum(
        jnp.dot(x, cmat_ref[...], preferred_element_type=jnp.float32) + cbias_ref[...],
        0.0)
    # fc + ReLU (bf16 MXU inputs, f32 accumulation).
    h = jnp.maximum(
        jnp.dot(feat.astype(jnp.bfloat16), fcw_ref[...],
                preferred_element_type=jnp.float32) + fcb_ref[...],
        0.0)
    # entity scoring + sigmoid.
    s = jnp.dot(h.astype(jnp.bfloat16), e2t_ref[...],
                preferred_element_type=jnp.float32) + b_ref[...]
    out_ref[...] = jax.nn.sigmoid(s)


class LFrameworkPallas:
    """JAX/Pallas re-implementation of LFramework.forward with a ConvE scorer
    standing in for the abstract self.predict / self.mdl."""

    def __init__(self, num_entities=256, num_relations=16, entity_dim=32,
                 emb_2D_d1=4, emb_2D_d2=8, num_out_channels=4,
                 batch_size=8, tile_b=128, tile_e=2048):
        assert emb_2D_d1 * emb_2D_d2 == entity_dim
        self.num_entities = num_entities
        self.num_relations = num_relations
        self.entity_dim = entity_dim
        self.d1, self.d2 = emb_2D_d1, emb_2D_d2
        self.num_ch = num_out_channels
        self.batch_size = batch_size            # kept for API parity (dev_batch_size)
        self.dummy_e = 0                        # kg.dummy_e
        self.dummy_r = 0                        # kg.dummy_r

        KH = KW = 3
        self.H, self.W = 2 * emb_2D_d1, emb_2D_d2
        self.OH, self.OW = self.H - KH + 1, self.W - KW + 1
        self.feat_dim = num_out_channels * self.OH * self.OW
        self.hw = self.H * self.W

        # Tiling: 128-row batch tile works on every generation (use 256 on v6e/v7x
        # if batch is large); entity tile is a multiple of 128 for lane-dense stores.
        self.tile_b = tile_b
        self.ne_pad = _round_up(num_entities, 128)
        self.tile_e = min(_round_up(tile_e, 128), self.ne_pad)
        self.ne_pad = _round_up(self.ne_pad, self.tile_e)

        # ----- deterministic parameter init (synthetic; no checkpoint loading) -----
        key = jax.random.PRNGKey(0)
        ks = jax.random.split(key, 6)
        self.entity_emb = (jax.random.normal(ks[0], (num_entities, entity_dim)) * 0.1
                           ).astype(jnp.float32)
        self.relation_emb = (jax.random.normal(ks[1], (num_relations, entity_dim)) * 0.1
                             ).astype(jnp.float32)
        self.conv_w = np.asarray(jax.random.normal(ks[2], (num_out_channels, 1, KH, KW)) * 0.1,
                                 dtype=np.float32)
        self.conv_b = np.asarray(jax.random.normal(ks[3], (num_out_channels,)) * 0.01,
                                 dtype=np.float32)
        fc_w = (jax.random.normal(ks[4], (entity_dim, self.feat_dim)) * 0.05
                ).astype(jnp.float32)                                   # torch fc.weight
        self.fc_w_t = jnp.transpose(fc_w).astype(jnp.bfloat16)          # (FEAT, HID) bf16
        self.fc_b = (jax.random.normal(ks[5], (entity_dim,)) * 0.01
                     ).astype(jnp.float32).reshape(1, entity_dim)

        # entity_embeddings.T padded to NE_pad lanes; zeros in the padded columns.
        e2t_full = jnp.zeros((entity_dim, self.ne_pad), jnp.float32)
        e2t_full = e2t_full.at[:, :num_entities].set(jnp.transpose(self.entity_emb))
        self.e2_t = e2t_full.astype(jnp.bfloat16)
        self.score_b = jnp.zeros((1, self.ne_pad), jnp.float32)         # ConvE's self.b

        # Build the im2col conv matrix: x_flat(B, H*W) @ conv_mat(H*W, FEAT) reproduces
        # the 3x3 valid conv with channel-major (c, i, j) flattening (matches .view(B,-1)).
        conv_mat = np.zeros((self.hw, self.feat_dim), np.float32)
        conv_bias = np.zeros((1, self.feat_dim), np.float32)
        for c in range(num_out_channels):
            for i in range(self.OH):
                for j in range(self.OW):
                    col = c * self.OH * self.OW + i * self.OW + j
                    conv_bias[0, col] = self.conv_b[c]
                    for ki in range(KH):
                        for kj in range(KW):
                            conv_mat[(i + ki) * self.W + (j + kj), col] += self.conv_w[c, 0, ki, kj]
        self.conv_mat = jnp.asarray(conv_mat)
        self.conv_bias = jnp.asarray(conv_bias)

        self._build_forward()

    # ------------------------------------------------------------------ pallas glue
    def _build_forward(self):
        d1, d2, hw = self.d1, self.d2, self.hw
        FEAT, HID = self.feat_dim, self.entity_dim
        TILE_B, TILE_E, NE_PAD = self.tile_b, self.tile_e, self.ne_pad

        def scores_fn(e1, r, entity_emb, relation_emb, conv_mat, conv_bias,
                      fc_w_t, fc_b, e2_t, score_b):
            n_pad = e1.shape[0]
            # gather + concat + flatten inside the jit (no per-chunk HBM round trips)
            E1 = entity_emb[e1].reshape(n_pad, d1, d2)
            R = relation_emb[r].reshape(n_pad, d1, d2)
            x = jnp.concatenate([E1, R], axis=1).reshape(n_pad, hw)     # (N, H*W) f32

            grid = (n_pad // TILE_B, NE_PAD // TILE_E)
            return pl.pallas_call(
                conve_score_kernel,
                out_shape=jax.ShapeDtypeStruct((n_pad, NE_PAD), jnp.float32),
                grid_spec=pltpu.PrefetchScalarGridSpec(
                    num_scalar_prefetch=0,
                    grid=grid,
                    in_specs=[
                        pl.BlockSpec((TILE_B, hw), lambda b, e: (b, 0)),    # x_flat
                        pl.BlockSpec((hw, FEAT), lambda b, e: (0, 0)),      # conv_mat
                        pl.BlockSpec((1, FEAT), lambda b, e: (0, 0)),       # conv_bias
                        pl.BlockSpec((FEAT, HID), lambda b, e: (0, 0)),     # fc.weight.T
                        pl.BlockSpec((1, HID), lambda b, e: (0, 0)),        # fc bias
                        pl.BlockSpec((HID, TILE_E), lambda b, e: (0, e)),   # E2^T tile
                        pl.BlockSpec((1, TILE_E), lambda b, e: (0, e)),     # score bias tile
                    ],
                    out_specs=pl.BlockSpec((TILE_B, TILE_E), lambda b, e: (b, e)),
                ),
                compiler_params=pltpu.CompilerParams(
                    dimension_semantics=("parallel", "parallel")),
            )(x, conv_mat, conv_bias, fc_w_t, fc_b, e2_t, score_b)

        self._scores_fn = jax.jit(scores_fn)

    # ------------------------------------------------------------ LFramework methods
    def make_full_batch(self, mini_batch, batch_size, multi_answers=False):
        dummy_example = (self.dummy_e, self.dummy_e, self.dummy_r)
        for _ in range(batch_size - len(mini_batch)):
            mini_batch.append(dummy_example)

    def _score_examples(self, examples):
        n = len(examples)
        n_pad = max(_round_up(n, self.tile_b), self.tile_b)
        e1 = np.full((n_pad,), self.dummy_e, dtype=np.int32)   # pad once with dummies
        r = np.full((n_pad,), self.dummy_r, dtype=np.int32)
        for i, (h, _t, rel) in enumerate(examples):
            e1[i] = h
            r[i] = rel
        scores = self._scores_fn(jnp.asarray(e1), jnp.asarray(r),
                                 self.entity_emb, self.relation_emb,
                                 self.conv_mat, self.conv_bias,
                                 self.fc_w_t, self.fc_b, self.e2_t, self.score_b)
        # slice off both the padded rows and the padded entity columns exactly once
        return scores[:n, :self.num_entities]

    # stands in for the abstract LFramework.predict (delegated to the ConvE mdl)
    def predict(self, mini_batch, verbose=False):
        return self._score_examples(list(mini_batch))

    # LFramework.forward: one padded launch is row-wise equivalent to the original
    # chunk -> pad -> predict -> slice -> concat loop.
    def forward(self, examples, verbose=False):
        return self._score_examples(list(examples))

    # TODO(synk): run_train (Adam optimizer, grad clipping), checkpoint save/load,
    # logging/tqdm and embedding-projector export are host-side training-loop
    # plumbing with no Pallas equivalent; intentionally omitted.


def reference_scores(model, examples):
    """Pure-JAX reference (explicit slice-based conv, same bf16 matmul casts)."""
    e1 = jnp.asarray([t[0] for t in examples], dtype=jnp.int32)
    r = jnp.asarray([t[2] for t in examples], dtype=jnp.int32)
    E1 = model.entity_emb[e1].reshape(-1, model.d1, model.d2)
    R = model.relation_emb[r].reshape(-1, model.d1, model.d2)
    x = jnp.concatenate([E1, R], axis=1)
    N = x.shape[0]
    OH, OW = model.OH, model.OW
    chans = []
    for c in range(model.num_ch):
        acc = jnp.zeros((N, OH, OW), jnp.float32)
        for ki in range(3):
            for kj in range(3):
                acc = acc + x[:, ki:ki + OH, kj:kj + OW] * float(model.conv_w[c, 0, ki, kj])
        chans.append(jnp.maximum(acc + float(model.conv_b[c]), 0.0))
    feat = jnp.stack(chans, axis=1).reshape(N, -1)     # channel-major like torch .view
    h = jnp.maximum(
        jnp.dot(feat.astype(jnp.bfloat16), model.fc_w_t,
                preferred_element_type=jnp.float32) + model.fc_b, 0.0)
    s = jnp.dot(h.astype(jnp.bfloat16), model.e2_t[:, :model.num_entities],
                preferred_element_type=jnp.float32) + model.score_b[:, :model.num_entities]
    return jax.nn.sigmoid(s)


if __name__ == "__main__":
    model = LFrameworkPallas(num_entities=256, num_relations=16, entity_dim=32,
                             emb_2D_d1=4, emb_2D_d2=8, num_out_channels=4,
                             batch_size=8)

    rng = np.random.RandomState(0)
    num_examples = 20   # not a multiple of the batch tile -> exercises the padding path
    examples = [(int(rng.randint(model.num_entities)),
                 int(rng.randint(model.num_entities)),
                 int(rng.randint(model.num_relations)))
                for _ in range(num_examples)]

    scores = model.forward(examples, verbose=False)
    scores = jax.block_until_ready(scores)
    assert scores.shape == (num_examples, model.num_entities)
    assert scores.dtype == jnp.float32

    ref = jax.block_until_ready(reference_scores(model, examples))
    np.testing.assert_allclose(np.asarray(scores), np.asarray(ref), rtol=2e-2, atol=5e-3)

    print("KERNEL_OK")
</pallas_src>

<mosaic_0001>
module attributes {stable_mosaic.version = 11 : i64} {
  func.func @conve_score_kernel(%arg0: i32, %arg1: i32, %arg2: memref<128x64xf32, #tpu.memory_space<vmem>>, %arg3: memref<64x144xf32, #tpu.memory_space<vmem>>, %arg4: memref<1x144xf32, #tpu.memory_space<vmem>>, %arg5: memref<144x32xbf16, #tpu.memory_space<vmem>>, %arg6: memref<1x32xf32, #tpu.memory_space<vmem>>, %arg7: memref<32x256xbf16, #tpu.memory_space<vmem>>, %arg8: memref<1x256xf32, #tpu.memory_space<vmem>>, %arg9: memref<128x256xf32, #tpu.memory_space<vmem>>) attributes {dimension_semantics = [#tpu.dimension_semantics<parallel>, #tpu.dimension_semantics<parallel>], iteration_bounds = array<i64: 1, 1>, scalar_prefetch = 0 : i64, scratch_operands = 0 : i64, tpu.core_type = #tpu.core_type<tc>, window_params = [{transform_indices = @transform_0, window_bounds = array<i64: 128, 64>}, {pipeline_mode = #tpu.pipeline_mode<synchronous>, transform_indices = @transform_1, window_bounds = array<i64: 64, 144>}, {pipeline_mode = #tpu.pipeline_mode<synchronous>, transform_indices = @transform_2, window_bounds = array<i64: 1, 144>}, {pipeline_mode = #tpu.pipeline_mode<synchronous>, transform_indices = @transform_3, window_bounds = array<i64: 144, 32>}, {pipeline_mode = #tpu.pipeline_mode<synchronous>, transform_indices = @transform_4, window_bounds = array<i64: 1, 32>}, {transform_indices = @transform_5, window_bounds = array<i64: 32, 256>}, {transform_indices = @transform_6, window_bounds = array<i64: 1, 256>}, {transform_indices = @transform_7, window_bounds = array<i64: 128, 256>}]} {
    %c0 = arith.constant 0 : index
    %c0_0 = arith.constant 0 : index
    %0 = vector.load %arg2[%c0, %c0_0] : memref<128x64xf32, #tpu.memory_space<vmem>>, vector<128x64xf32>
    %c0_1 = arith.constant 0 : index
    %c0_2 = arith.constant 0 : index
    %1 = vector.load %arg3[%c0_1, %c0_2] : memref<64x144xf32, #tpu.memory_space<vmem>>, vector<64x144xf32>
    %cst = arith.constant dense<0.000000e+00> : vector<128x144xf32>
    %2 = tpu.matmul %0, %1, %cst {dimension_numbers = #tpu.dot_dimension_numbers<[1], [0], [0], [1], [0, 0, 1, 1], [], []>} : vector<128x64xf32>, vector<64x144xf32>, vector<128x144xf32> -> vector<128x144xf32>
    %c0_3 = arith.constant 0 : index
    %c0_4 = arith.constant 0 : index
    %3 = vector.load %arg4[%c0_3, %c0_4] : memref<1x144xf32, #tpu.memory_space<vmem>>, vector<1x144xf32>
    %4 = vector.broadcast %3 : vector<1x144xf32> to vector<128x144xf32>
    %5 = arith.addf %2, %4 : vector<128x144xf32>
    %cst_5 = arith.constant 0.000000e+00 : f32
    %6 = vector.broadcast %cst_5 : f32 to vector<128x144xf32>
    %7 = arith.maximumf %5, %6 : vector<128x144xf32>
    %8 = arith.truncf %7 : vector<128x144xf32> to vector<128x144xbf16>
    %c0_6 = arith.constant 0 : index
    %c0_7 = arith.constant 0 : index
    %9 = vector.load %arg5[%c0_6, %c0_7] : memref<144x32xbf16, #tpu.memory_space<vmem>>, vector<144x32xbf16>
    %cst_8 = arith.constant dense<0.000000e+00> : vector<128x32xf32>
    %10 = tpu.matmul %8, %9, %cst_8 {dimension_numbers = #tpu.dot_dimension_numbers<[1], [0], [0], [1], [0, 0, 1, 1], [], []>} : vector<128x144xbf16>, vector<144x32xbf16>, vector<128x32xf32> -> vector<128x32xf32>
    %c0_9 = arith.constant 0 : index
    %c0_10 = arith.constant 0 : index
    %11 = vector.load %arg6[%c0_9, %c0_10] : memref<1x32xf32, #tpu.memory_space<vmem>>, vector<1x32xf32>
    %12 = vector.broadcast %11 : vector<1x32xf32> to vector<128x32xf32>
    %13 = arith.addf %10, %12 : vector<128x32xf32>
    %cst_11 = arith.constant 0.000000e+00 : f32
    %14 = vector.broadcast %cst_11 : f32 to vector<128x32xf32>
    %15 = arith.maximumf %13, %14 : vector<128x32xf32>
    %16 = arith.truncf %15 : vector<128x32xf32> to vector<128x32xbf16>
    %c0_12 = arith.constant 0 : index
    %c0_13 = arith.constant 0 : index
    %17 = vector.load %arg7[%c0_12, %c0_13] : memref<32x256xbf16, #tpu.memory_space<vmem>>, vector<32x256xbf16>
    %cst_14 = arith.constant dense<0.000000e+00> : vector<128x256xf32>
    %18 = tpu.matmul %16, %17, %cst_14 {dimension_numbers = #tpu.dot_dimension_numbers<[1], [0], [0], [1], [0, 0, 1, 1], [], []>} : vector<128x32xbf16>, vector<32x256xbf16>, vector<128x256xf32> -> vector<128x256xf32>
    %c0_15 = arith.constant 0 : index
    %c0_16 = arith.constant 0 : index
    %19 = vector.load %arg8[%c0_15, %c0_16] : memref<1x256xf32, #tpu.memory_space<vmem>>, vector<1x256xf32>
    %20 = vector.broadcast %19 : vector<1x256xf32> to vector<128x256xf32>
    %21 = arith.addf %18, %20 : vector<128x256xf32>
    %22 = arith.negf %21 : vector<128x256xf32>
    %23 = math.exp %22 : vector<128x256xf32>
    %cst_17 = arith.constant 1.000000e+00 : f32
    %24 = vector.broadcast %cst_17 : f32 to vector<128x256xf32>
    %25 = arith.addf %24, %23 : vector<128x256xf32>
    %26 = arith.divf %24, %25 : vector<128x256xf32>
    %c0_18 = arith.constant 0 : index
    %c0_19 = arith.constant 0 : index
    %27 = vector.load %arg9[%c0_18, %c0_19] : memref<128x256xf32, #tpu.memory_space<vmem>>, vector<128x256xf32>
    tpu.vector_store %arg9[%c0_18, %c0_19], %26 {strides = array<i32>} : memref<128x256xf32, #tpu.memory_space<vmem>>, vector<128x256xf32>,
    return
  }
  func.func @transform_0(%arg0: i32, %arg1: i32) -> (i32, i32) {
    %c0_i32 = arith.constant 0 : i32
    %c0_i32_0 = arith.constant 0 : i32
    return %arg0, %c0_i32 : i32, i32
  }
  func.func @transform_1(%arg0: i32, %arg1: i32) -> (i32, i32) {
    %c0_i32 = arith.constant 0 : i32
    %c0_i32_0 = arith.constant 0 : i32
    %c0_i32_1 = arith.constant 0 : i32
    return %c0_i32, %c0_i32_0 : i32, i32
  }
  func.func @transform_2(%arg0: i32, %arg1: i32) -> (i32, i32) {
    %c0_i32 = arith.constant 0 : i32
    %c0_i32_0 = arith.constant 0 : i32
    %c0_i32_1 = arith.constant 0 : i32
    return %c0_i32, %c0_i32_0 : i32, i32
  }
  func.func @transform_3(%arg0: i32, %arg1: i32) -> (i32, i32) {
    %c0_i32 = arith.constant 0 : i32
    %c0_i32_0 = arith.constant 0 : i32
    %c0_i32_1 = arith.constant 0 : i32
    return %c0_i32, %c0_i32_0 : i32, i32
  }
  func.func @transform_4(%arg0: i32, %arg1: i32) -> (i32, i32) {
    %c0_i32 = arith.constant 0 : i32
    %c0_i32_0 = arith.constant 0 : i32
    %c0_i32_1 = arith.constant 0 : i32
    return %c0_i32, %c0_i32_0 : i32, i32
  }
  func.func @transform_5(%arg0: i32, %arg1: i32) -> (i32, i32) {
    %c0_i32 = arith.constant 0 : i32
    %c0_i32_0 = arith.constant 0 : i32
    return %c0_i32, %arg1 : i32, i32
  }
  func.func @transform_6(%arg0: i32, %arg1: i32) -> (i32, i32) {
    %c0_i32 = arith.constant 0 : i32
    %c0_i32_0 = arith.constant 0 : i32
    return %c0_i32, %arg1 : i32, i32
  }
  func.func @transform_7(%arg0: i32, %arg1: i32) -> (i32, i32) {
    %c0_i32 = arith.constant 0 : i32
    return %arg0, %arg1 : i32, i32
  }
}

</mosaic_0001>

<llo_original>
// kernel: scores_fn.1
$region0: #{scores_fn.1}
  #allocation0 [shape = 'u32[]', space=smem, size = 0x4, offset = 0x4, fixed_abs, tag = 'smem constant byte address 0x4 - core index']
  #allocation1 [shape = 'u32[72,128]{1,0:T(1,128)}', space=vmem, size = 0x9000, scoped, tag = 'internal scratch']
  %s0 = inlined_call_operand.vmem [shape: f32[128,64], index: 0, kind: input, shape index: {}]
  %s1 = inlined_call_operand.vmem [shape: f32[64,144], index: 1, kind: input, shape index: {}]
  %s2 = inlined_call_operand.vmem [shape: f32[1,144], index: 2, kind: input, shape index: {}]
  %s3 = inlined_call_operand.vmem [shape: bf16[144,32], index: 3, kind: input, shape index: {}]
  %s4 = inlined_call_operand.vmem [shape: f32[1,32], index: 4, kind: input, shape index: {}]
  %s5 = inlined_call_operand.vmem [shape: bf16[32,256], index: 5, kind: input, shape index: {}]
  %s6 = inlined_call_operand.vmem [shape: f32[1,256], index: 6, kind: input, shape index: {}]
  %s7 = inlined_call_operand.hbm [shape: f32[128,256], index: 7, kind: output, shape index: {}]
  %s8 = sld [smem:[#allocation0]]
  $region38: #{scores_fn.1} parent=0
    _
  %s10 = ssub.s32 1, %s8
  %s11 = scalar_select 0, %s10, %s8
  $region1: #{scores_fn.1} parent=0
    #allocation2 [shape = 'u8[131072]{0}', space=vmem, size = 0x20000, scoped, tag = 'output window, operand 0, single buffered']
    #allocation3 [shape = 's32[1]{0}', space=sflag, size = 0x4, scoped, tag = 'scoped memory for scores_fn.1']
    %12 = vsyncpa [#allocation3], 0
    // Predicated region
    $region2: #{scores_fn.1} parent=1 // pred_check
      _
    $region3: #{scores_fn.1} parent=1 // pred_check_branch
      %14 = sbr.rel (0) target = $region5
    $region4: #{scores_fn.1} parent=1 // pred_region
      _
    $region5: #{scores_fn.1} parent=1 // pred_fallthru
      _
    // Predicated region
    $region6: #{scores_fn.1} parent=1 // pred_check
      _
    $region7: #{scores_fn.1} parent=1 // pred_check_branch
      %16 = sbr.rel (0) target = $region9
    $region8: #{scores_fn.1} parent=1 // pred_region
      _
    $region9: #{scores_fn.1} parent=1 // pred_fallthru
      _
    // Predicated region
    $region10: #{scores_fn.1} parent=1 // pred_check
      _
    $region11: #{scores_fn.1} parent=1 // pred_check_branch
      %18 = sbr.rel (0) target = $region13
    $region12: #{scores_fn.1} parent=1 // pred_region
      _
    $region13: #{scores_fn.1} parent=1 // pred_fallthru
      _
    // Predicated region
    $region14: #{scores_fn.1} parent=1 // pred_check
      _
    $region15: #{scores_fn.1} parent=1 // pred_check_branch
      %20 = sbr.rel (0) target = $region17
    $region16: #{scores_fn.1} parent=1 // pred_region
      _
    $region17: #{scores_fn.1} parent=1 // pred_fallthru
      _
    // Predicated region
    $region18: #{scores_fn.1} parent=1 // pred_check
      _
    $region19: #{scores_fn.1} parent=1 // pred_check_branch
      %22 = sbr.rel (0) target = $region21
    $region20: #{scores_fn.1} parent=1 // pred_region
      _
    $region21: #{scores_fn.1} parent=1 // pred_fallthru
      _
    // Predicated region
    $region22: #{scores_fn.1} parent=1 // pred_check
      _
    $region23: #{scores_fn.1} parent=1 // pred_check_branch
      %24 = sbr.rel (0) target = $region25
    $region24: #{scores_fn.1} parent=1 // pred_region
      _
    $region25: #{scores_fn.1} parent=1 // pred_fallthru
      _
    // Predicated region
    $region26: #{scores_fn.1} parent=1 // pred_check
      _
    $region27: #{scores_fn.1} parent=1 // pred_check_branch
      %26 = sbr.rel (0) target = $region29
    $region28: #{scores_fn.1} parent=1 // pred_region
      _
    $region29: #{scores_fn.1} parent=1 // pred_fallthru
      _
    %v28 = vld [vmem:[%s0] sm:$0xff]
    %v29 = vld [vmem:[%s0 + $0x8] sm:$0xff]
    %v30 = vld [vmem:[%s0 + $0x10] sm:$0xff]
    %v31 = vld [vmem:[%s0 + $0x18] sm:$0xff]
    %v32 = vld [vmem:[%s0 + $0x20] sm:$0xff]
    %v33 = vld [vmem:[%s0 + $0x28] sm:$0xff]
    %v34 = vld [vmem:[%s0 + $0x30] sm:$0xff]
    %v35 = vld [vmem:[%s0 + $0x38] sm:$0xff]
    %v36 = vld [vmem:[%s0 + $0x40] sm:$0xff]
    %v37 = vld [vmem:[%s0 + $0x48] sm:$0xff]
    %v38 = vld [vmem:[%s0 + $0x50] sm:$0xff]
    %v39 = vld [vmem:[%s0 + $0x58] sm:$0xff]
    %v40 = vld [vmem:[%s0 + $0x60] sm:$0xff]
    %v41 = vld [vmem:[%s0 + $0x68] sm:$0xff]
    %v42 = vld [vmem:[%s0 + $0x70] sm:$0xff]
    %v43 = vld [vmem:[%s0 + $0x78] sm:$0xff]
    %v44 = vld [vmem:[%s1] sm:$0xff]
    %v45 = vld [vmem:[%s1 + $0x8] sm:$0xff]
    %v46 = vld [vmem:[%s1 + $0x10] sm:$0xff]
    %v47 = vld [vmem:[%s1 + $0x18] sm:$0xff]
    %v48 = vld [vmem:[%s1 + $0x20] sm:$0xff]
    %v49 = vld [vmem:[%s1 + $0x28] sm:$0xff]
    %v50 = vld [vmem:[%s1 + $0x30] sm:$0xff]
    %v51 = vld [vmem:[%s1 + $0x38] sm:$0xff]
    %v52 = vld [vmem:[%s1 + $0x40] sm:$0xff]
    %v53 = vld [vmem:[%s1 + $0x48] sm:$0xff]
    %v54 = vld [vmem:[%s1 + $0x50] sm:$0xff]
    %v55 = vld [vmem:[%s1 + $0x58] sm:$0xff]
    %v56 = vld [vmem:[%s1 + $0x60] sm:$0xff]
    %v57 = vld [vmem:[%s1 + $0x68] sm:$0xff]
    %v58 = vld [vmem:[%s1 + $0x70] sm:$0xff]
    %v59 = vld [vmem:[%s1 + $0x78] sm:$0xff]
    %v60 = vld [vmem:[%s2] sm:$0x3]
    %v62 = vperm.slane %v60, 0
    %v63 = vperm.slane %v60, 1
    %vm66 = vcmask 523264
    %v68 = vsel %vm66, %v28, 0
    %v71 = vsel %vm66, %v29, 0
    %v74 = vsel %vm66, %v30, 0
    %v77 = vsel %vm66, %v31, 0
    %v80 = vsel %vm66, %v32, 0
    %v83 = vsel %vm66, %v33, 0
    %v86 = vsel %vm66, %v34, 0
    %v89 = vsel %vm66, %v35, 0
    %v92 = vsel %vm66, %v36, 0
    %v95 = vsel %vm66, %v37, 0
    %v98 = vsel %vm66, %v38, 0
    %v101 = vsel %vm66, %v39, 0
    %v104 = vsel %vm66, %v40, 0
    %v107 = vsel %vm66, %v41, 0
    %v110 = vsel %vm66, %v42, 0
    %v113 = vsel %vm66, %v43, 0
    %115 = vmatpush.msra.mxu0 0.0
    %116 = vmatpush.msra.mxu0 0.0
    %117 = vmatpush.msra.mxu0 0.0
    %118 = vmatpush.msra.mxu0 0.0
    %119 = vmatpush.msra.mxu0 0.0
    %120 = vmatpush.msra.mxu0 0.0
    %121 = vmatpush.msra.mxu0 0.0
    %122 = vmatpush.msra.mxu0 0.0
    %123 = vmatpush.msra.mxu0 %v58
    %124 = vmatpush.msra.mxu0 %v56
    %125 = vmatpush.msra.mxu0 %v54
    %126 = vmatpush.msra.mxu0 %v52
    %127 = vmatpush.msra.mxu0 %v50
    %128 = vmatpush.msra.mxu0 %v48
    %129 = vmatpush.msra.mxu0 %v46
    %130 = vmatpush.msra.mxu0 %v44
    %131 = vmatmul.f32.gmra.mxu0 %v68
    %v132 = vpop.f32.mrf.mxu0
    %v133 = vadd.f32 %v62, %v132
    %134 = vmatmul.f32.gmra.mxu0 %v71
    %v135 = vpop.f32.mrf.mxu0
    %v136 = vadd.f32 %v62, %v135
    %137 = vmatmul.f32.gmra.mxu0 %v74
    %v138 = vpop.f32.mrf.mxu0
    %v139 = vadd.f32 %v62, %v138
    %140 = vmatmul.f32.gmra.mxu0 %v77
    %v141 = vpop.f32.mrf.mxu0
    %v142 = vadd.f32 %v62, %v141
    %143 = vmatmul.f32.gmra.mxu0 %v80
    %v144 = vpop.f32.mrf.mxu0
    %v145 = vadd.f32 %v62, %v144
    %146 = vmatmul.f32.gmra.mxu0 %v83
    %v147 = vpop.f32.mrf.mxu0
    %v148 = vadd.f32 %v62, %v147
    %149 = vmatmul.f32.gmra.mxu0 %v86
    %v150 = vpop.f32.mrf.mxu0
    %v151 = vadd.f32 %v62, %v150
    %152 = vmatmul.f32.gmra.mxu0 %v89
    %v153 = vpop.f32.mrf.mxu0
    %v154 = vadd.f32 %v62, %v153
    %155 = vmatmul.f32.gmra.mxu0 %v92
    %v156 = vpop.f32.mrf.mxu0
    %v157 = vadd.f32 %v62, %v156
    %158 = vmatmul.f32.gmra.mxu0 %v95
    %v159 = vpop.f32.mrf.mxu0
    %v160 = vadd.f32 %v62, %v159
    %161 = vmatmul.f32.gmra.mxu0 %v98
    %v162 = vpop.f32.mrf.mxu0
    %v163 = vadd.f32 %v62, %v162
    %164 = vmatmul.f32.gmra.mxu0 %v101
    %v165 = vpop.f32.mrf.mxu0
    %v166 = vadd.f32 %v62, %v165
    %167 = vmatmul.f32.gmra.mxu0 %v104
    %v168 = vpop.f32.mrf.mxu0
    %v169 = vadd.f32 %v62, %v168
    %170 = vmatmul.f32.gmra.mxu0 %v107
    %v171 = vpop.f32.mrf.mxu0
    %v172 = vadd.f32 %v62, %v171
    %173 = vmatmul.f32.gmra.mxu0 %v110
    %v174 = vpop.f32.mrf.mxu0
    %v175 = vadd.f32 %v62, %v174
    %176 = vmatmul.f32.gmra.mxu0 %v113
    %v177 = vpop.f32.mrf.mxu0
    %v178 = vadd.f32 %v62, %v177
    %179 = vdwg.mxu0
    %180 = vmatpush.msra.mxu0 0.0
    %181 = vmatpush.msra.mxu0 0.0
    %182 = vmatpush.msra.mxu0 0.0
    %183 = vmatpush.msra.mxu0 0.0
    %184 = vmatpush.msra.mxu0 0.0
    %185 = vmatpush.msra.mxu0 0.0
    %186 = vmatpush.msra.mxu0 0.0
    %187 = vmatpush.msra.mxu0 0.0
    %188 = vmatpush.msra.mxu0 %v59
    %189 = vmatpush.msra.mxu0 %v57
    %190 = vmatpush.msra.mxu0 %v55
    %191 = vmatpush.msra.mxu0 %v53
    %192 = vmatpush.msra.mxu0 %v51
    %193 = vmatpush.msra.mxu0 %v49
    %194 = vmatpush.msra.mxu0 %v47
    %195 = vmatpush.msra.mxu0 %v45
    %196 = vmatmul.f32.gmra.mxu0 %v68
    %v197 = vpop.f32.mrf.mxu0
    %v198 = vadd.f32 %v63, %v197
    %199 = vmatmul.f32.gmra.mxu0 %v71
    %v200 = vpop.f32.mrf.mxu0
    %v201 = vadd.f32 %v63, %v200
    %202 = vmatmul.f32.gmra.mxu0 %v74
    %v203 = vpop.f32.mrf.mxu0
    %v204 = vadd.f32 %v63, %v203
    %205 = vmatmul.f32.gmra.mxu0 %v77
    %v206 = vpop.f32.mrf.mxu0
    %v207 = vadd.f32 %v63, %v206
    %208 = vmatmul.f32.gmra.mxu0 %v80
    %v209 = vpop.f32.mrf.mxu0
    %v210 = vadd.f32 %v63, %v209
    %211 = vmatmul.f32.gmra.mxu0 %v83
    %v212 = vpop.f32.mrf.mxu0
    %v213 = vadd.f32 %v63, %v212
    %214 = vmatmul.f32.gmra.mxu0 %v86
    %v215 = vpop.f32.mrf.mxu0
    %v216 = vadd.f32 %v63, %v215
    %217 = vmatmul.f32.gmra.mxu0 %v89
    %v218 = vpop.f32.mrf.mxu0
    %v219 = vadd.f32 %v63, %v218
    %220 = vmatmul.f32.gmra.mxu0 %v92
    %v221 = vpop.f32.mrf.mxu0
    %v222 = vadd.f32 %v63, %v221
    %223 = vmatmul.f32.gmra.mxu0 %v95
    %v224 = vpop.f32.mrf.mxu0
    %v225 = vadd.f32 %v63, %v224
    %226 = vmatmul.f32.gmra.mxu0 %v98
    %v227 = vpop.f32.mrf.mxu0
    %v228 = vadd.f32 %v63, %v227
    %229 = vmatmul.f32.gmra.mxu0 %v101
    %v230 = vpop.f32.mrf.mxu0
    %v231 = vadd.f32 %v63, %v230
    %232 = vmatmul.f32.gmra.mxu0 %v104
    %v233 = vpop.f32.mrf.mxu0
    %v234 = vadd.f32 %v63, %v233
    %235 = vmatmul.f32.gmra.mxu0 %v107
    %v236 = vpop.f32.mrf.mxu0
    %v237 = vadd.f32 %v63, %v236
    %238 = vmatmul.f32.gmra.mxu0 %v110
    %v239 = vpop.f32.mrf.mxu0
    %v240 = vadd.f32 %v63, %v239
    %241 = vmatmul.f32.gmra.mxu0 %v113
    %v242 = vpop.f32.mrf.mxu0
    %v243 = vadd.f32 %v63, %v242
    %244 = vdwg.mxu0
    %v245 = vmax.f32 %v133, 0.0
    %v246 = vmax.f32 %v198, 0.0
    %v247 = vmax.f32 %v136, 0.0
    %v248 = vmax.f32 %v201, 0.0
    %v249 = vmax.f32 %v139, 0.0
    %v250 = vmax.f32 %v204, 0.0
    %v251 = vmax.f32 %v142, 0.0
    %v252 = vmax.f32 %v207, 0.0
    %v253 = vmax.f32 %v145, 0.0
    %v254 = vmax.f32 %v210, 0.0
    %v255 = vmax.f32 %v148, 0.0
    %v256 = vmax.f32 %v213, 0.0
    %v257 = vmax.f32 %v151, 0.0
    %v258 = vmax.f32 %v216, 0.0
    %v259 = vmax.f32 %v154, 0.0
    %v260 = vmax.f32 %v219, 0.0
    %v261 = vmax.f32 %v157, 0.0
    %v262 = vmax.f32 %v222, 0.0
    %v263 = vmax.f32 %v160, 0.0
    %v264 = vmax.f32 %v225, 0.0
    %v265 = vmax.f32 %v163, 0.0
    %v266 = vmax.f32 %v228, 0.0
    %v267 = vmax.f32 %v166, 0.0
    %v268 = vmax.f32 %v231, 0.0
    %v269 = vmax.f32 %v169, 0.0
    %v270 = vmax.f32 %v234, 0.0
    %v271 = vmax.f32 %v172, 0.0
    %v272 = vmax.f32 %v237, 0.0
    %v273 = vmax.f32 %v175, 0.0
    %v274 = vmax.f32 %v240, 0.0
    %v275 = vmax.f32 %v178, 0.0
    %v276 = vmax.f32 %v243, 0.0
    %v277 = vpack.c.bf16 %v247, %v245
    %v278 = vpack.c.bf16 %v248, %v246
    %v279 = vpack.c.bf16 %v251, %v249
    %v280 = vpack.c.bf16 %v252, %v250
    %v281 = vpack.c.bf16 %v255, %v253
    %v282 = vpack.c.bf16 %v256, %v254
    %v283 = vpack.c.bf16 %v259, %v257
    %v284 = vpack.c.bf16 %v260, %v258
    %v285 = vpack.c.bf16 %v263, %v261
    %v286 = vpack.c.bf16 %v264, %v262
    %v287 = vpack.c.bf16 %v267, %v265
    %v288 = vpack.c.bf16 %v268, %v266
    %v289 = vpack.c.bf16 %v271, %v269
    %v290 = vpack.c.bf16 %v272, %v270
    %v291 = vpack.c.bf16 %v275, %v273
    %v292 = vpack.c.bf16 %v276, %v274
    %v293 = vld [vmem:[%s3] sm:$0xf]
    %v294 = vld [vmem:[%s3 + $0x4] sm:$0xf]
    %v295 = vld [vmem:[%s3 + $0x8] sm:$0xf]
    %v296 = vld [vmem:[%s3 + $0xc] sm:$0xf]
    %v297 = vld [vmem:[%s3 + $0x10] sm:$0xf]
    %v298 = vld [vmem:[%s3 + $0x14] sm:$0xf]
    %v299 = vld [vmem:[%s3 + $0x18] sm:$0xf]
    %v300 = vld [vmem:[%s3 + $0x1c] sm:$0xf]
    %v301 = vld [vmem:[%s3 + $0x20] sm:$0xf]
    %v302 = vld [vmem:[%s3 + $0x24] sm:$0xf]
    %v303 = vld [vmem:[%s3 + $0x28] sm:$0xf]
    %v304 = vld [vmem:[%s3 + $0x2c] sm:$0xf]
    %v305 = vld [vmem:[%s3 + $0x30] sm:$0xf]
    %v306 = vld [vmem:[%s3 + $0x34] sm:$0xf]
    %v307 = vld [vmem:[%s3 + $0x38] sm:$0xf]
    %v308 = vld [vmem:[%s3 + $0x3c] sm:$0xf]
    %v309 = vld [vmem:[%s3 + $0x40] sm:$0xf]
    %v310 = vld [vmem:[%s3 + $0x44] sm:$0xf]
    %v311 = vld [vmem:[%s4] sm:$0x1]
    %v313 = vperm.slane %v311, 0
    %v333 = vunpack.c.l.b16 %v293
    %v334 = vunpack.c.l.b16 %v294
    %v335 = vunpack.c.l.b16 %v295
    %v336 = vunpack.c.l.b16 %v296
    %v337 = vunpack.c.l.b16 %v297
    %v338 = vunpack.c.l.b16 %v298
    %v339 = vunpack.c.l.b16 %v299
    %v340 = vunpack.c.l.b16 %v300
    %v341 = vunpack.c.l.b16 %v301
    %v342 = vunpack.c.l.b16 %v302
    %v343 = vunpack.c.l.b16 %v303
    %v344 = vunpack.c.l.b16 %v304
    %v345 = vunpack.c.l.b16 %v305
    %v346 = vunpack.c.l.b16 %v306
    %v347 = vunpack.c.l.b16 %v307
    %v348 = vunpack.c.l.b16 %v308
    %v349 = vunpack.c.l.b16 %v309
    %v350 = vunpack.c.l.b16 %v310
    %v351 = vpack.c.b16 %v334, %v333
    %v352 = vpack.c.b16 %v336, %v335
    %v353 = vpack.c.b16 %v338, %v337
    %v354 = vpack.c.b16 %v340, %v339
    %v355 = vpack.c.b16 %v342, %v341
    %v356 = vpack.c.b16 %v344, %v343
    %v357 = vpack.c.b16 %v346, %v345
    %v358 = vpack.c.b16 %v348, %v347
    %v359 = vpack.c.b16 %v350, %v349
    %vm369 = vcmask 130048
    %v371 = vsel %vm369, %v278, 0
    %v374 = vsel %vm369, %v280, 0
    %v377 = vsel %vm369, %v282, 0
    %v380 = vsel %vm369, %v284, 0
    %v383 = vsel %vm369, %v286, 0
    %v386 = vsel %vm369, %v288, 0
    %v389 = vsel %vm369, %v290, 0
    %v392 = vsel %vm369, %v292, 0
    %394 = vmatpush.bf16.msra.mxu0 %v358
    %395 = vmatpush.bf16.msra.mxu0 %v357
    %396 = vmatpush.bf16.msra.mxu0 %v356
    %397 = vmatpush.bf16.msra.mxu0 %v355
    %398 = vmatpush.bf16.msra.mxu0 %v354
    %399 = vmatpush.bf16.msra.mxu0 %v353
    %400 = vmatpush.bf16.msra.mxu0 %v352
    %401 = vmatpush.bf16.msra.mxu0 %v351
    %402 = vmatmul.bf16.gmra.mxu0 %v277
    %v403 = vpop.f32.mrf.mxu0
    %v404 = vadd.f32 %v313, %v403
    %v405 = vpop.f32.mrf.mxu0
    %v406 = vadd.f32 %v313, %v405
    %407 = vmatmul.bf16.gmra.mxu0 %v279
    %v408 = vpop.f32.mrf.mxu0
    %v409 = vadd.f32 %v313, %v408
    %v410 = vpop.f32.mrf.mxu0
    %v411 = vadd.f32 %v313, %v410
    %412 = vmatmul.bf16.gmra.mxu0 %v281
    %v413 = vpop.f32.mrf.mxu0
    %v414 = vadd.f32 %v313, %v413
    %v415 = vpop.f32.mrf.mxu0
    %v416 = vadd.f32 %v313, %v415
    %417 = vmatmul.bf16.gmra.mxu0 %v283
    %v418 = vpop.f32.mrf.mxu0
    %v419 = vadd.f32 %v313, %v418
    %v420 = vpop.f32.mrf.mxu0
    %v421 = vadd.f32 %v313, %v420
    %422 = vmatmul.bf16.gmra.mxu0 %v285
    %v423 = vpop.f32.mrf.mxu0
    %v424 = vadd.f32 %v313, %v423
    %v425 = vpop.f32.mrf.mxu0
    %v426 = vadd.f32 %v313, %v425
    %427 = vmatmul.bf16.gmra.mxu0 %v287
    %v428 = vpop.f32.mrf.mxu0
    %v429 = vadd.f32 %v313, %v428
    %v430 = vpop.f32.mrf.mxu0
    %v431 = vadd.f32 %v313, %v430
    %432 = vmatmul.bf16.gmra.mxu0 %v289
    %v433 = vpop.f32.mrf.mxu0
    %v434 = vadd.f32 %v313, %v433
    %v435 = vpop.f32.mrf.mxu0
    %v436 = vadd.f32 %v313, %v435
    %437 = vmatmul.bf16.gmra.mxu0 %v291
    %v438 = vpop.f32.mrf.mxu0
    %v439 = vadd.f32 %v313, %v438
    %v440 = vpop.f32.mrf.mxu0
    %v441 = vadd.f32 %v313, %v440
    %442 = vdwg.mxu0
    %443 = vmatpush.bf16.msra.mxu0 0
    %444 = vmatpush.bf16.msra.mxu0 0
    %445 = vmatpush.bf16.msra.mxu0 0
    %446 = vmatpush.bf16.msra.mxu0 0
    %447 = vmatpush.bf16.msra.mxu0 0
    %448 = vmatpush.bf16.msra.mxu0 0
    %449 = vmatpush.bf16.msra.mxu0 0
    %450 = vmatpush.bf16.msra.mxu0 %v359
    %451 = vmatmul.bf16.gmra.mxu0 %v371
    %v452 = vpop.f32.mrf.mxu0
    %v453 = vadd.f32 %v404, %v452
    %v454 = vpop.f32.mrf.mxu0
    %v455 = vadd.f32 %v406, %v454
    %456 = vmatmul.bf16.gmra.mxu0 %v374
    %v457 = vpop.f32.mrf.mxu0
    %v458 = vadd.f32 %v409, %v457
    %v459 = vpop.f32.mrf.mxu0
    %v460 = vadd.f32 %v411, %v459
    %461 = vmatmul.bf16.gmra.mxu0 %v377
    %v462 = vpop.f32.mrf.mxu0
    %v463 = vadd.f32 %v414, %v462
    %v464 = vpop.f32.mrf.mxu0
    %v465 = vadd.f32 %v416, %v464
    %466 = vmatmul.bf16.gmra.mxu0 %v380
    %v467 = vpop.f32.mrf.mxu0
    %v468 = vadd.f32 %v419, %v467
    %v469 = vpop.f32.mrf.mxu0
    %v470 = vadd.f32 %v421, %v469
    %471 = vmatmul.bf16.gmra.mxu0 %v383
    %v472 = vpop.f32.mrf.mxu0
    %v473 = vadd.f32 %v424, %v472
    %v474 = vpop.f32.mrf.mxu0
    %v475 = vadd.f32 %v426, %v474
    %476 = vmatmul.bf16.gmra.mxu0 %v386
    %v477 = vpop.f32.mrf.mxu0
    %v478 = vadd.f32 %v429, %v477
    %v479 = vpop.f32.mrf.mxu0
    %v480 = vadd.f32 %v431, %v479
    %481 = vmatmul.bf16.gmra.mxu0 %v389
    %v482 = vpop.f32.mrf.mxu0
    %v483 = vadd.f32 %v434, %v482
    %v484 = vpop.f32.mrf.mxu0
    %v485 = vadd.f32 %v436, %v484
    %486 = vmatmul.bf16.gmra.mxu0 %v392
    %v487 = vpop.f32.mrf.mxu0
    %v488 = vadd.f32 %v439, %v487
    %v489 = vpop.f32.mrf.mxu0
    %v490 = vadd.f32 %v441, %v489
    %491 = vdwg.mxu0
    %v492 = vmax.f32 %v453, 0.0
    %v493 = vmax.f32 %v455, 0.0
    %v494 = vmax.f32 %v458, 0.0
    %v495 = vmax.f32 %v460, 0.0
    %v496 = vmax.f32 %v463, 0.0
    %v497 = vmax.f32 %v465, 0.0
    %v498 = vmax.f32 %v468, 0.0
    %v499 = vmax.f32 %v470, 0.0
    %v500 = vmax.f32 %v473, 0.0
    %v501 = vmax.f32 %v475, 0.0
    %v502 = vmax.f32 %v478, 0.0
    %v503 = vmax.f32 %v480, 0.0
    %v504 = vmax.f32 %v483, 0.0
    %v505 = vmax.f32 %v485, 0.0
    %v506 = vmax.f32 %v488, 0.0
    %v507 = vmax.f32 %v490, 0.0
    %v508 = vpack.c.bf16 %v493, %v492
    %v509 = vpack.c.bf16 %v495, %v494
    %v510 = vpack.c.bf16 %v497, %v496
    %v511 = vpack.c.bf16 %v499, %v498
    %v512 = vpack.c.bf16 %v501, %v500
    %v513 = vpack.c.bf16 %v503, %v502
    %v514 = vpack.c.bf16 %v505, %v504
    %v515 = vpack.c.bf16 %v507, %v506
    %v516 = vld [vmem:[%s5] sm:$0xff]
    %v517 = vld [vmem:[%s5 + $0x8] sm:$0xff]
    %v518 = vld [vmem:[%s5 + $0x10] sm:$0xff]
    %v519 = vld [vmem:[%s5 + $0x18] sm:$0xff]
    %v520 = vld [vmem:[%s6] sm:$0x3]
    %v522 = vperm.slane %v520, 0
    %v523 = vperm.slane %v520, 1
    %v530 = vunpack.c.l.b16 %v516
    %v531 = vunpack.c.h.b16 %v516
    %v532 = vunpack.c.l.b16 %v517
    %v533 = vunpack.c.h.b16 %v517
    %v534 = vunpack.c.l.b16 %v518
    %v535 = vunpack.c.h.b16 %v518
    %v536 = vunpack.c.l.b16 %v519
    %v537 = vunpack.c.h.b16 %v519
    %v538 = vpack.c.b16 %v532, %v530
    %v539 = vpack.c.b16 %v533, %v531
    %v540 = vpack.c.b16 %v536, %v534
    %v541 = vpack.c.b16 %v537, %v535
    %vm546 = vcmask 261120
    %v548 = vsel %vm546, %v508, 0
    %v551 = vsel %vm546, %v509, 0
    %v554 = vsel %vm546, %v510, 0
    %v557 = vsel %vm546, %v511, 0
    %v560 = vsel %vm546, %v512, 0
    %v563 = vsel %vm546, %v513, 0
    %v566 = vsel %vm546, %v514, 0
    %v569 = vsel %vm546, %v515, 0
    %571 = vmatpush.bf16.msra.mxu0 0
    %572 = vmatpush.bf16.msra.mxu0 0
    %573 = vmatpush.bf16.msra.mxu0 0
    %574 = vmatpush.bf16.msra.mxu0 0
    %575 = vmatpush.bf16.msra.mxu0 0
    %576 = vmatpush.bf16.msra.mxu0 0
    %577 = vmatpush.bf16.msra.mxu0 %v540
    %578 = vmatpush.bf16.msra.mxu0 %v538
    %579 = vmatmul.bf16.gmra.mxu0 %v548
    %v580 = vpop.f32.mrf.mxu0
    %v581 = vadd.f32 %v522, %v580
    %v582 = vpop.f32.mrf.mxu0
    %v583 = vadd.f32 %v522, %v582
    %584 = vmatmul.bf16.gmra.mxu0 %v551
    %v585 = vpop.f32.mrf.mxu0
    %v586 = vadd.f32 %v522, %v585
    %v587 = vpop.f32.mrf.mxu0
    %v588 = vadd.f32 %v522, %v587
    %589 = vmatmul.bf16.gmra.mxu0 %v554
    %v590 = vpop.f32.mrf.mxu0
    %v591 = vadd.f32 %v522, %v590
    %v592 = vpop.f32.mrf.mxu0
    %v593 = vadd.f32 %v522, %v592
    %594 = vmatmul.bf16.gmra.mxu0 %v557
    %v595 = vpop.f32.mrf.mxu0
    %v596 = vadd.f32 %v522, %v595
    %v597 = vpop.f32.mrf.mxu0
    %v598 = vadd.f32 %v522, %v597
    %599 = vmatmul.bf16.gmra.mxu0 %v560
    %v600 = vpop.f32.mrf.mxu0
    %v601 = vadd.f32 %v522, %v600
    %v602 = vpop.f32.mrf.mxu0
    %v603 = vadd.f32 %v522, %v602
    %604 = vmatmul.bf16.gmra.mxu0 %v563
    %v605 = vpop.f32.mrf.mxu0
    %v606 = vadd.f32 %v522, %v605
    %v607 = vpop.f32.mrf.mxu0
    %v608 = vadd.f32 %v522, %v607
    %609 = vmatmul.bf16.gmra.mxu0 %v566
    %v610 = vpop.f32.mrf.mxu0
    %v611 = vadd.f32 %v522, %v610
    %v612 = vpop.f32.mrf.mxu0
    %v613 = vadd.f32 %v522, %v612
    %614 = vmatmul.bf16.gmra.mxu0 %v569
    %v615 = vpop.f32.mrf.mxu0
    %v616 = vadd.f32 %v522, %v615
    %v617 = vpop.f32.mrf.mxu0
    %v618 = vadd.f32 %v522, %v617
    %619 = vdwg.mxu0
    %620 = vmatpush.bf16.msra.mxu0 0
    %621 = vmatpush.bf16.msra.mxu0 0
    %622 = vmatpush.bf16.msra.mxu0 0
    %623 = vmatpush.bf16.msra.mxu0 0
    %624 = vmatpush.bf16.msra.mxu0 0
    %625 = vmatpush.bf16.msra.mxu0 0
    %626 = vmatpush.bf16.msra.mxu0 %v541
    %627 = vmatpush.bf16.msra.mxu0 %v539
    %628 = vmatmul.bf16.gmra.mxu0 %v548
    %v629 = vpop.f32.mrf.mxu0
    %v630 = vadd.f32 %v523, %v629
    %v631 = vpop.f32.mrf.mxu0
    %v632 = vadd.f32 %v523, %v631
    %633 = vmatmul.bf16.gmra.mxu0 %v551
    %v634 = vpop.f32.mrf.mxu0
    %v635 = vadd.f32 %v523, %v634
    %v636 = vpop.f32.mrf.mxu0
    %v637 = vadd.f32 %v523, %v636
    %638 = vmatmul.bf16.gmra.mxu0 %v554
    %v639 = vpop.f32.mrf.mxu0
    %v640 = vadd.f32 %v523, %v639
    %v641 = vpop.f32.mrf.mxu0
    %v642 = vadd.f32 %v523, %v641
    %643 = vmatmul.bf16.gmra.mxu0 %v557
    %v644 = vpop.f32.mrf.mxu0
    %v645 = vadd.f32 %v523, %v644
    %v646 = vpop.f32.mrf.mxu0
    %v647 = vadd.f32 %v523, %v646
    %648 = vmatmul.bf16.gmra.mxu0 %v560
    %v649 = vpop.f32.mrf.mxu0
    %v650 = vadd.f32 %v523, %v649
    %v651 = vpop.f32.mrf.mxu0
    %v652 = vadd.f32 %v523, %v651
    %653 = vmatmul.bf16.gmra.mxu0 %v563
    %v654 = vpop.f32.mrf.mxu0
    %v655 = vadd.f32 %v523, %v654
    %v656 = vpop.f32.mrf.mxu0
    %v657 = vadd.f32 %v523, %v656
    %658 = vmatmul.bf16.gmra.mxu0 %v566
    %v659 = vpop.f32.mrf.mxu0
    %v660 = vadd.f32 %v523, %v659
    %v661 = vpop.f32.mrf.mxu0
    %v662 = vadd.f32 %v523, %v661
    %663 = vmatmul.bf16.gmra.mxu0 %v569
    %v664 = vpop.f32.mrf.mxu0
    %v665 = vadd.f32 %v523, %v664
    %v666 = vpop.f32.mrf.mxu0
    %v667 = vadd.f32 %v523, %v666
    %668 = vdwg.mxu0
    %v669 = vxor.u32 %v581, 2147483648
    %v670 = vxor.u32 %v630, 2147483648
    %v671 = vxor.u32 %v583, 2147483648
    %v672 = vxor.u32 %v632, 2147483648
    %v673 = vxor.u32 %v586, 2147483648
    %v674 = vxor.u32 %v635, 2147483648
    %v675 = vxor.u32 %v588, 2147483648
    %v676 = vxor.u32 %v637, 2147483648
    %v677 = vxor.u32 %v591, 2147483648
    %v678 = vxor.u32 %v640, 2147483648
    %v679 = vxor.u32 %v593, 2147483648
    %v680 = vxor.u32 %v642, 2147483648
    %v681 = vxor.u32 %v596, 2147483648
    %v682 = vxor.u32 %v645, 2147483648
    %v683 = vxor.u32 %v598, 2147483648
    %v684 = vxor.u32 %v647, 2147483648
    %v685 = vxor.u32 %v601, 2147483648
    %v686 = vxor.u32 %v650, 2147483648
    %v687 = vxor.u32 %v603, 2147483648
    %v688 = vxor.u32 %v652, 2147483648
    %v689 = vxor.u32 %v606, 2147483648
    %v690 = vxor.u32 %v655, 2147483648
    %v691 = vxor.u32 %v608, 2147483648
    %v692 = vxor.u32 %v657, 2147483648
    %v693 = vxor.u32 %v611, 2147483648
    %v694 = vxor.u32 %v660, 2147483648
    %v695 = vxor.u32 %v613, 2147483648
    %v696 = vxor.u32 %v662, 2147483648
    %v697 = vxor.u32 %v616, 2147483648
    %v698 = vxor.u32 %v665, 2147483648
    %v699 = vxor.u32 %v618, 2147483648
    %v700 = vxor.u32 %v667, 2147483648
    %v701 = vmul.f32 %v669, 1.442695
    %v702 = vpow.pop %v701
    %v703 = vmul.f32 %v670, 1.442695
    %v704 = vpow.pop %v703
    %v705 = vmul.f32 %v671, 1.442695
    %v706 = vpow.pop %v705
    %v707 = vmul.f32 %v672, 1.442695
    %v708 = vpow.pop %v707
    %v709 = vmul.f32 %v673, 1.442695
    %v710 = vpow.pop %v709
    %v711 = vmul.f32 %v674, 1.442695
    %v712 = vpow.pop %v711
    %v713 = vmul.f32 %v675, 1.442695
    %v714 = vpow.pop %v713
    %v715 = vmul.f32 %v676, 1.442695
    %v716 = vpow.pop %v715
    %v717 = vmul.f32 %v677, 1.442695
    %v718 = vpow.pop %v717
    %v719 = vmul.f32 %v678, 1.442695
    %v720 = vpow.pop %v719
    %v721 = vmul.f32 %v679, 1.442695
    %v722 = vpow.pop %v721
    %v723 = vmul.f32 %v680, 1.442695
    %v724 = vpow.pop %v723
    %v725 = vmul.f32 %v681, 1.442695
    %v726 = vpow.pop %v725
    %v727 = vmul.f32 %v682, 1.442695
    %v728 = vpow.pop %v727
    %v729 = vmul.f32 %v683, 1.442695
    %v730 = vpow.pop %v729
    %v731 = vmul.f32 %v684, 1.442695
    %v732 = vpow.pop %v731
    %v733 = vmul.f32 %v685, 1.442695
    %v734 = vpow.pop %v733
    %v735 = vmul.f32 %v686, 1.442695
    %v736 = vpow.pop %v735
    %v737 = vmul.f32 %v687, 1.442695
    %v738 = vpow.pop %v737
    %v739 = vmul.f32 %v688, 1.442695
    %v740 = vpow.pop %v739
    %v741 = vmul.f32 %v689, 1.442695
    %v742 = vpow.pop %v741
    %v743 = vmul.f32 %v690, 1.442695
    %v744 = vpow.pop %v743
    %v745 = vmul.f32 %v691, 1.442695
    %v746 = vpow.pop %v745
    %v747 = vmul.f32 %v692, 1.442695
    %v748 = vpow.pop %v747
    %v749 = vmul.f32 %v693, 1.442695
    %v750 = vpow.pop %v749
    %v751 = vmul.f32 %v694, 1.442695
    %v752 = vpow.pop %v751
    %v753 = vmul.f32 %v695, 1.442695
    %v754 = vpow.pop %v753
    %v755 = vmul.f32 %v696, 1.442695
    %v756 = vpow.pop %v755
    %v757 = vmul.f32 %v697, 1.442695
    %v758 = vpow.pop %v757
    %v759 = vmul.f32 %v698, 1.442695
    %v760 = vpow.pop %v759
    %v761 = vmul.f32 %v699, 1.442695
    %v762 = vpow.pop %v761
    %v763 = vmul.f32 %v700, 1.442695
    %v764 = vpow.pop %v763
    %v765 = vadd.f32 %v702, 1.0
    %v766 = vadd.f32 %v704, 1.0
    %v767 = vadd.f32 %v706, 1.0
    %v768 = vadd.f32 %v708, 1.0
    %v769 = vadd.f32 %v710, 1.0
    %v770 = vadd.f32 %v712, 1.0
    %v771 = vadd.f32 %v714, 1.0
    %v772 = vadd.f32 %v716, 1.0
    %v773 = vadd.f32 %v718, 1.0
    %v774 = vadd.f32 %v720, 1.0
    %v775 = vadd.f32 %v722, 1.0
    %v776 = vadd.f32 %v724, 1.0
    %v777 = vadd.f32 %v726, 1.0
    %v778 = vadd.f32 %v728, 1.0
    %v779 = vadd.f32 %v730, 1.0
    %v780 = vadd.f32 %v732, 1.0
    %v781 = vadd.f32 %v734, 1.0
    %v782 = vadd.f32 %v736, 1.0
    %v783 = vadd.f32 %v738, 1.0
    %v784 = vadd.f32 %v740, 1.0
    %v785 = vadd.f32 %v742, 1.0
    %v786 = vadd.f32 %v744, 1.0
    %v787 = vadd.f32 %v746, 1.0
    %v788 = vadd.f32 %v748, 1.0
    %v789 = vadd.f32 %v750, 1.0
    %v790 = vadd.f32 %v752, 1.0
    %v791 = vadd.f32 %v754, 1.0
    %v792 = vadd.f32 %v756, 1.0
    %v793 = vadd.f32 %v758, 1.0
    %v794 = vadd.f32 %v760, 1.0
    %v795 = vadd.f32 %v762, 1.0
    %v796 = vadd.f32 %v764, 1.0
    %v797 = vrcp.pop %v765
    %v798 = vmul.f32 %v765, %v797
    %v799 = vsub.f32 1.0, %v798
    %v800 = vmul.f32 %v797, %v799
    %v801 = vadd.f32 %v797, %v800
    %vm802 = vweird.f32 %v765
    %vm803 = vweird.f32 %v797
    %vm804 = vmor %vm802, %vm803
    %v805 = vsel %vm804, %v797, %v801
    %v806 = vand.u32 2147483647, %v765
    %vm807 = vcmp.eq.f32.partialorder %v806, 8.507059e+37
    %v808 = vand.u32 %v765, 2147483648
    %v809 = vor.u32 1.1754944e-38, %v808
    %v810 = vsel %vm807, %v809, %v805
    %v811 = vmul.f32 1.0, %v810
    %v812 = vrcp.pop %v766
    %v813 = vmul.f32 %v766, %v812
    %v814 = vsub.f32 1.0, %v813
    %v815 = vmul.f32 %v812, %v814
    %v816 = vadd.f32 %v812, %v815
    %vm817 = vweird.f32 %v766
    %vm818 = vweird.f32 %v812
    %vm819 = vmor %vm817, %vm818
    %v820 = vsel %vm819, %v812, %v816
    %v821 = vand.u32 2147483647, %v766
    %vm822 = vcmp.eq.f32.partialorder %v821, 8.507059e+37
    %v823 = vand.u32 %v766, 2147483648
    %v824 = vor.u32 1.1754944e-38, %v823
    %v825 = vsel %vm822, %v824, %v820
    %v826 = vmul.f32 1.0, %v825
    %v827 = vrcp.pop %v767
    %v828 = vmul.f32 %v767, %v827
    %v829 = vsub.f32 1.0, %v828
    %v830 = vmul.f32 %v827, %v829
    %v831 = vadd.f32 %v827, %v830
    %vm832 = vweird.f32 %v767
    %vm833 = vweird.f32 %v827
    %vm834 = vmor %vm832, %vm833
    %v835 = vsel %vm834, %v827, %v831
    %v836 = vand.u32 2147483647, %v767
    %vm837 = vcmp.eq.f32.partialorder %v836, 8.507059e+37
    %v838 = vand.u32 %v767, 2147483648
    %v839 = vor.u32 1.1754944e-38, %v838
    %v840 = vsel %vm837, %v839, %v835
    %v841 = vmul.f32 1.0, %v840
    %v842 = vrcp.pop %v768
    %v843 = vmul.f32 %v768, %v842
    %v844 = vsub.f32 1.0, %v843
    %v845 = vmul.f32 %v842, %v844
    %v846 = vadd.f32 %v842, %v845
    %vm847 = vweird.f32 %v768
    %vm848 = vweird.f32 %v842
    %vm849 = vmor %vm847, %vm848
    %v850 = vsel %vm849, %v842, %v846
    %v851 = vand.u32 2147483647, %v768
    %vm852 = vcmp.eq.f32.partialorder %v851, 8.507059e+37
    %v853 = vand.u32 %v768, 2147483648
    %v854 = vor.u32 1.1754944e-38, %v853
    %v855 = vsel %vm852, %v854, %v850
    %v856 = vmul.f32 1.0, %v855
    %v857 = vrcp.pop %v769
    %v858 = vmul.f32 %v769, %v857
    %v859 = vsub.f32 1.0, %v858
    %v860 = vmul.f32 %v857, %v859
    %v861 = vadd.f32 %v857, %v860
    %vm862 = vweird.f32 %v769
    %vm863 = vweird.f32 %v857
    %vm864 = vmor %vm862, %vm863
    %v865 = vsel %vm864, %v857, %v861
    %v866 = vand.u32 2147483647, %v769
    %vm867 = vcmp.eq.f32.partialorder %v866, 8.507059e+37
    %v868 = vand.u32 %v769, 2147483648
    %v869 = vor.u32 1.1754944e-38, %v868
    %v870 = vsel %vm867, %v869, %v865
    %v871 = vmul.f32 1.0, %v870
    %v872 = vrcp.pop %v770
    %v873 = vmul.f32 %v770, %v872
    %v874 = vsub.f32 1.0, %v873
    %v875 = vmul.f32 %v872, %v874
    %v876 = vadd.f32 %v872, %v875
    %vm877 = vweird.f32 %v770
    %vm878 = vweird.f32 %v872
    %vm879 = vmor %vm877, %vm878
    %v880 = vsel %vm879, %v872, %v876
    %v881 = vand.u32 2147483647, %v770
    %vm882 = vcmp.eq.f32.partialorder %v881, 8.507059e+37
    %v883 = vand.u32 %v770, 2147483648
    %v884 = vor.u32 1.1754944e-38, %v883
    %v885 = vsel %vm882, %v884, %v880
    %v886 = vmul.f32 1.0, %v885
    %v887 = vrcp.pop %v771
    %v888 = vmul.f32 %v771, %v887
    %v889 = vsub.f32 1.0, %v888
    %v890 = vmul.f32 %v887, %v889
    %v891 = vadd.f32 %v887, %v890
    %vm892 = vweird.f32 %v771
    %vm893 = vweird.f32 %v887
    %vm894 = vmor %vm892, %vm893
    %v895 = vsel %vm894, %v887, %v891
    %v896 = vand.u32 2147483647, %v771
    %vm897 = vcmp.eq.f32.partialorder %v896, 8.507059e+37
    %v898 = vand.u32 %v771, 2147483648
    %v899 = vor.u32 1.1754944e-38, %v898
    %v900 = vsel %vm897, %v899, %v895
    %v901 = vmul.f32 1.0, %v900
    %v902 = vrcp.pop %v772
    %v903 = vmul.f32 %v772, %v902
    %v904 = vsub.f32 1.0, %v903
    %v905 = vmul.f32 %v902, %v904
    %v906 = vadd.f32 %v902, %v905
    %vm907 = vweird.f32 %v772
    %vm908 = vweird.f32 %v902
    %vm909 = vmor %vm907, %vm908
    %v910 = vsel %vm909, %v902, %v906
    %v911 = vand.u32 2147483647, %v772
    %vm912 = vcmp.eq.f32.partialorder %v911, 8.507059e+37
    %v913 = vand.u32 %v772, 2147483648
    %v914 = vor.u32 1.1754944e-38, %v913
    %v915 = vsel %vm912, %v914, %v910
    %v916 = vmul.f32 1.0, %v915
    %v917 = vrcp.pop %v773
    %v918 = vmul.f32 %v773, %v917
    %v919 = vsub.f32 1.0, %v918
    %v920 = vmul.f32 %v917, %v919
    %v921 = vadd.f32 %v917, %v920
    %vm922 = vweird.f32 %v773
    %vm923 = vweird.f32 %v917
    %vm924 = vmor %vm922, %vm923
    %v925 = vsel %vm924, %v917, %v921
    %v926 = vand.u32 2147483647, %v773
    %vm927 = vcmp.eq.f32.partialorder %v926, 8.507059e+37
    %v928 = vand.u32 %v773, 2147483648
    %v929 = vor.u32 1.1754944e-38, %v928
    %v930 = vsel %vm927, %v929, %v925
    %v931 = vmul.f32 1.0, %v930
    %v932 = vrcp.pop %v774
    %v933 = vmul.f32 %v774, %v932
    %v934 = vsub.f32 1.0, %v933
    %v935 = vmul.f32 %v932, %v934
    %v936 = vadd.f32 %v932, %v935
    %vm937 = vweird.f32 %v774
    %vm938 = vweird.f32 %v932
    %vm939 = vmor %vm937, %vm938
    %v940 = vsel %vm939, %v932, %v936
    %v941 = vand.u32 2147483647, %v774
    %vm942 = vcmp.eq.f32.partialorder %v941, 8.507059e+37
    %v943 = vand.u32 %v774, 2147483648
    %v944 = vor.u32 1.1754944e-38, %v943
    %v945 = vsel %vm942, %v944, %v940
    %v946 = vmul.f32 1.0, %v945
    %v947 = vrcp.pop %v775
    %v948 = vmul.f32 %v775, %v947
    %v949 = vsub.f32 1.0, %v948
    %v950 = vmul.f32 %v947, %v949
    %v951 = vadd.f32 %v947, %v950
    %vm952 = vweird.f32 %v775
    %vm953 = vweird.f32 %v947
    %vm954 = vmor %vm952, %vm953
    %v955 = vsel %vm954, %v947, %v951
    %v956 = vand.u32 2147483647, %v775
    %vm957 = vcmp.eq.f32.partialorder %v956, 8.507059e+37
    %v958 = vand.u32 %v775, 2147483648
    %v959 = vor.u32 1.1754944e-38, %v958
    %v960 = vsel %vm957, %v959, %v955
    %v961 = vmul.f32 1.0, %v960
    %v962 = vrcp.pop %v776
    %v963 = vmul.f32 %v776, %v962
    %v964 = vsub.f32 1.0, %v963
    %v965 = vmul.f32 %v962, %v964
    %v966 = vadd.f32 %v962, %v965
    %vm967 = vweird.f32 %v776
    %vm968 = vweird.f32 %v962
    %vm969 = vmor %vm967, %vm968
    %v970 = vsel %vm969, %v962, %v966
    %v971 = vand.u32 2147483647, %v776
    %vm972 = vcmp.eq.f32.partialorder %v971, 8.507059e+37
    %v973 = vand.u32 %v776, 2147483648
    %v974 = vor.u32 1.1754944e-38, %v973
    %v975 = vsel %vm972, %v974, %v970
    %v976 = vmul.f32 1.0, %v975
    %v977 = vrcp.pop %v777
    %v978 = vmul.f32 %v777, %v977
    %v979 = vsub.f32 1.0, %v978
    %v980 = vmul.f32 %v977, %v979
    %v981 = vadd.f32 %v977, %v980
    %vm982 = vweird.f32 %v777
    %vm983 = vweird.f32 %v977
    %vm984 = vmor %vm982, %vm983
    %v985 = vsel %vm984, %v977, %v981
    %v986 = vand.u32 2147483647, %v777
    %vm987 = vcmp.eq.f32.partialorder %v986, 8.507059e+37
    %v988 = vand.u32 %v777, 2147483648
    %v989 = vor.u32 1.1754944e-38, %v988
    %v990 = vsel %vm987, %v989, %v985
    %v991 = vmul.f32 1.0, %v990
    %v992 = vrcp.pop %v778
    %v993 = vmul.f32 %v778, %v992
    %v994 = vsub.f32 1.0, %v993
    %v995 = vmul.f32 %v992, %v994
    %v996 = vadd.f32 %v992, %v995
    %vm997 = vweird.f32 %v778
    %vm998 = vweird.f32 %v992
    %vm999 = vmor %vm997, %vm998
    %v1000 = vsel %vm999, %v992, %v996
    %v1001 = vand.u32 2147483647, %v778
    %vm1002 = vcmp.eq.f32.partialorder %v1001, 8.507059e+37
    %v1003 = vand.u32 %v778, 2147483648
    %v1004 = vor.u32 1.1754944e-38, %v1003
    %v1005 = vsel %vm1002, %v1004, %v1000
    %v1006 = vmul.f32 1.0, %v1005
    %v1007 = vrcp.pop %v779
    %v1008 = vmul.f32 %v779, %v1007
    %v1009 = vsub.f32 1.0, %v1008
    %v1010 = vmul.f32 %v1007, %v1009
    %v1011 = vadd.f32 %v1007, %v1010
    %vm1012 = vweird.f32 %v779
    %vm1013 = vweird.f32 %v1007
    %vm1014 = vmor %vm1012, %vm1013
    %v1015 = vsel %vm1014, %v1007, %v1011
    %v1016 = vand.u32 2147483647, %v779
    %vm1017 = vcmp.eq.f32.partialorder %v1016, 8.507059e+37
    %v1018 = vand.u32 %v779, 2147483648
    %v1019 = vor.u32 1.1754944e-38, %v1018
    %v1020 = vsel %vm1017, %v1019, %v1015
    %v1021 = vmul.f32 1.0, %v1020
    %v1022 = vrcp.pop %v780
    %v1023 = vmul.f32 %v780, %v1022
    %v1024 = vsub.f32 1.0, %v1023
    %v1025 = vmul.f32 %v1022, %v1024
    %v1026 = vadd.f32 %v1022, %v1025
    %vm1027 = vweird.f32 %v780
    %vm1028 = vweird.f32 %v1022
    %vm1029 = vmor %vm1027, %vm1028
    %v1030 = vsel %vm1029, %v1022, %v1026
    %v1031 = vand.u32 2147483647, %v780
    %vm1032 = vcmp.eq.f32.partialorder %v1031, 8.507059e+37
    %v1033 = vand.u32 %v780, 2147483648
    %v1034 = vor.u32 1.1754944e-38, %v1033
    %v1035 = vsel %vm1032, %v1034, %v1030
    %v1036 = vmul.f32 1.0, %v1035
    %v1037 = vrcp.pop %v781
    %v1038 = vmul.f32 %v781, %v1037
    %v1039 = vsub.f32 1.0, %v1038
    %v1040 = vmul.f32 %v1037, %v1039
    %v1041 = vadd.f32 %v1037, %v1040
    %vm1042 = vweird.f32 %v781
    %vm1043 = vweird.f32 %v1037
    %vm1044 = vmor %vm1042, %vm1043
    %v1045 = vsel %vm1044, %v1037, %v1041
    %v1046 = vand.u32 2147483647, %v781
    %vm1047 = vcmp.eq.f32.partialorder %v1046, 8.507059e+37
    %v1048 = vand.u32 %v781, 2147483648
    %v1049 = vor.u32 1.1754944e-38, %v1048
    %v1050 = vsel %vm1047, %v1049, %v1045
    %v1051 = vmul.f32 1.0, %v1050
    %v1052 = vrcp.pop %v782
    %v1053 = vmul.f32 %v782, %v1052
    %v1054 = vsub.f32 1.0, %v1053
    %v1055 = vmul.f32 %v1052, %v1054
    %v1056 = vadd.f32 %v1052, %v1055
    %vm1057 = vweird.f32 %v782
    %vm1058 = vweird.f32 %v1052
    %vm1059 = vmor %vm1057, %vm1058
    %v1060 = vsel %vm1059, %v1052, %v1056
    %v1061 = vand.u32 2147483647, %v782
    %vm1062 = vcmp.eq.f32.partialorder %v1061, 8.507059e+37
    %v1063 = vand.u32 %v782, 2147483648
    %v1064 = vor.u32 1.1754944e-38, %v1063
    %v1065 = vsel %vm1062, %v1064, %v1060
    %v1066 = vmul.f32 1.0, %v1065
    %v1067 = vrcp.pop %v783
    %v1068 = vmul.f32 %v783, %v1067
    %v1069 = vsub.f32 1.0, %v1068
    %v1070 = vmul.f32 %v1067, %v1069
    %v1071 = vadd.f32 %v1067, %v1070
    %vm1072 = vweird.f32 %v783
    %vm1073 = vweird.f32 %v1067
    %vm1074 = vmor %vm1072, %vm1073
    %v1075 = vsel %vm1074, %v1067, %v1071
    %v1076 = vand.u32 2147483647, %v783
    %vm1077 = vcmp.eq.f32.partialorder %v1076, 8.507059e+37
    %v1078 = vand.u32 %v783, 2147483648
    %v1079 = vor.u32 1.1754944e-38, %v1078
    %v1080 = vsel %vm1077, %v1079, %v1075
    %v1081 = vmul.f32 1.0, %v1080
    %v1082 = vrcp.pop %v784
    %v1083 = vmul.f32 %v784, %v1082
    %v1084 = vsub.f32 1.0, %v1083
    %v1085 = vmul.f32 %v1082, %v1084
    %v1086 = vadd.f32 %v1082, %v1085
    %vm1087 = vweird.f32 %v784
    %vm1088 = vweird.f32 %v1082
    %vm1089 = vmor %vm1087, %vm1088
    %v1090 = vsel %vm1089, %v1082, %v1086
    %v1091 = vand.u32 2147483647, %v784
    %vm1092 = vcmp.eq.f32.partialorder %v1091, 8.507059e+37
    %v1093 = vand.u32 %v784, 2147483648
    %v1094 = vor.u32 1.1754944e-38, %v1093
    %v1095 = vsel %vm1092, %v1094, %v1090
    %v1096 = vmul.f32 1.0, %v1095
    %v1097 = vrcp.pop %v785
    %v1098 = vmul.f32 %v785, %v1097
    %v1099 = vsub.f32 1.0, %v1098
    %v1100 = vmul.f32 %v1097, %v1099
    %v1101 = vadd.f32 %v1097, %v1100
    %vm1102 = vweird.f32 %v785
    %vm1103 = vweird.f32 %v1097
    %vm1104 = vmor %vm1102, %vm1103
    %v1105 = vsel %vm1104, %v1097, %v1101
    %v1106 = vand.u32 2147483647, %v785
    %vm1107 = vcmp.eq.f32.partialorder %v1106, 8.507059e+37
    %v1108 = vand.u32 %v785, 2147483648
    %v1109 = vor.u32 1.1754944e-38, %v1108
    %v1110 = vsel %vm1107, %v1109, %v1105
    %v1111 = vmul.f32 1.0, %v1110
    %v1112 = vrcp.pop %v786
    %v1113 = vmul.f32 %v786, %v1112
    %v1114 = vsub.f32 1.0, %v1113
    %v1115 = vmul.f32 %v1112, %v1114
    %v1116 = vadd.f32 %v1112, %v1115
    %vm1117 = vweird.f32 %v786
    %vm1118 = vweird.f32 %v1112
    %vm1119 = vmor %vm1117, %vm1118
    %v1120 = vsel %vm1119, %v1112, %v1116
    %v1121 = vand.u32 2147483647, %v786
    %vm1122 = vcmp.eq.f32.partialorder %v1121, 8.507059e+37
    %v1123 = vand.u32 %v786, 2147483648
    %v1124 = vor.u32 1.1754944e-38, %v1123
    %v1125 = vsel %vm1122, %v1124, %v1120
    %v1126 = vmul.f32 1.0, %v1125
    %v1127 = vrcp.pop %v787
    %v1128 = vmul.f32 %v787, %v1127
    %v1129 = vsub.f32 1.0, %v1128
    %v1130 = vmul.f32 %v1127, %v1129
    %v1131 = vadd.f32 %v1127, %v1130
    %vm1132 = vweird.f32 %v787
    %vm1133 = vweird.f32 %v1127
    %vm1134 = vmor %vm1132, %vm1133
    %v1135 = vsel %vm1134, %v1127, %v1131
    %v1136 = vand.u32 2147483647, %v787
    %vm1137 = vcmp.eq.f32.partialorder %v1136, 8.507059e+37
    %v1138 = vand.u32 %v787, 2147483648
    %v1139 = vor.u32 1.1754944e-38, %v1138
    %v1140 = vsel %vm1137, %v1139, %v1135
    %v1141 = vmul.f32 1.0, %v1140
    %v1142 = vrcp.pop %v788
    %v1143 = vmul.f32 %v788, %v1142
    %v1144 = vsub.f32 1.0, %v1143
    %v1145 = vmul.f32 %v1142, %v1144
    %v1146 = vadd.f32 %v1142, %v1145
    %vm1147 = vweird.f32 %v788
    %vm1148 = vweird.f32 %v1142
    %vm1149 = vmor %vm1147, %vm1148
    %v1150 = vsel %vm1149, %v1142, %v1146
    %v1151 = vand.u32 2147483647, %v788
    %vm1152 = vcmp.eq.f32.partialorder %v1151, 8.507059e+37
    %v1153 = vand.u32 %v788, 2147483648
    %v1154 = vor.u32 1.1754944e-38, %v1153
    %v1155 = vsel %vm1152, %v1154, %v1150
    %v1156 = vmul.f32 1.0, %v1155
    %v1157 = vrcp.pop %v789
    %v1158 = vmul.f32 %v789, %v1157
    %v1159 = vsub.f32 1.0, %v1158
    %v1160 = vmul.f32 %v1157, %v1159
    %v1161 = vadd.f32 %v1157, %v1160
    %vm1162 = vweird.f32 %v789
    %vm1163 = vweird.f32 %v1157
    %vm1164 = vmor %vm1162, %vm1163
    %v1165 = vsel %vm1164, %v1157, %v1161
    %v1166 = vand.u32 2147483647, %v789
    %vm1167 = vcmp.eq.f32.partialorder %v1166, 8.507059e+37
    %v1168 = vand.u32 %v789, 2147483648
    %v1169 = vor.u32 1.1754944e-38, %v1168
    %v1170 = vsel %vm1167, %v1169, %v1165
    %v1171 = vmul.f32 1.0, %v1170
    %v1172 = vrcp.pop %v790
    %v1173 = vmul.f32 %v790, %v1172
    %v1174 = vsub.f32 1.0, %v1173
    %v1175 = vmul.f32 %v1172, %v1174
    %v1176 = vadd.f32 %v1172, %v1175
    %vm1177 = vweird.f32 %v790
    %vm1178 = vweird.f32 %v1172
    %vm1179 = vmor %vm1177, %vm1178
    %v1180 = vsel %vm1179, %v1172, %v1176
    %v1181 = vand.u32 2147483647, %v790
    %vm1182 = vcmp.eq.f32.partialorder %v1181, 8.507059e+37
    %v1183 = vand.u32 %v790, 2147483648
    %v1184 = vor.u32 1.1754944e-38, %v1183
    %v1185 = vsel %vm1182, %v1184, %v1180
    %v1186 = vmul.f32 1.0, %v1185
    %v1187 = vrcp.pop %v791
    %v1188 = vmul.f32 %v791, %v1187
    %v1189 = vsub.f32 1.0, %v1188
    %v1190 = vmul.f32 %v1187, %v1189
    %v1191 = vadd.f32 %v1187, %v1190
    %vm1192 = vweird.f32 %v791
    %vm1193 = vweird.f32 %v1187
    %vm1194 = vmor %vm1192, %vm1193
    %v1195 = vsel %vm1194, %v1187, %v1191
    %v1196 = vand.u32 2147483647, %v791
    %vm1197 = vcmp.eq.f32.partialorder %v1196, 8.507059e+37
    %v1198 = vand.u32 %v791, 2147483648
    %v1199 = vor.u32 1.1754944e-38, %v1198
    %v1200 = vsel %vm1197, %v1199, %v1195
    %v1201 = vmul.f32 1.0, %v1200
    %v1202 = vrcp.pop %v792
    %v1203 = vmul.f32 %v792, %v1202
    %v1204 = vsub.f32 1.0, %v1203
    %v1205 = vmul.f32 %v1202, %v1204
    %v1206 = vadd.f32 %v1202, %v1205
    %vm1207 = vweird.f32 %v792
    %vm1208 = vweird.f32 %v1202
    %vm1209 = vmor %vm1207, %vm1208
    %v1210 = vsel %vm1209, %v1202, %v1206
    %v1211 = vand.u32 2147483647, %v792
    %vm1212 = vcmp.eq.f32.partialorder %v1211, 8.507059e+37
    %v1213 = vand.u32 %v792, 2147483648
    %v1214 = vor.u32 1.1754944e-38, %v1213
    %v1215 = vsel %vm1212, %v1214, %v1210
    %v1216 = vmul.f32 1.0, %v1215
    %v1217 = vrcp.pop %v793
    %v1218 = vmul.f32 %v793, %v1217
    %v1219 = vsub.f32 1.0, %v1218
    %v1220 = vmul.f32 %v1217, %v1219
    %v1221 = vadd.f32 %v1217, %v1220
    %vm1222 = vweird.f32 %v793
    %vm1223 = vweird.f32 %v1217
    %vm1224 = vmor %vm1222, %vm1223
    %v1225 = vsel %vm1224, %v1217, %v1221
    %v1226 = vand.u32 2147483647, %v793
    %vm1227 = vcmp.eq.f32.partialorder %v1226, 8.507059e+37
    %v1228 = vand.u32 %v793, 2147483648
    %v1229 = vor.u32 1.1754944e-38, %v1228
    %v1230 = vsel %vm1227, %v1229, %v1225
    %v1231 = vmul.f32 1.0, %v1230
    %v1232 = vrcp.pop %v794
    %v1233 = vmul.f32 %v794, %v1232
    %v1234 = vsub.f32 1.0, %v1233
    %v1235 = vmul.f32 %v1232, %v1234
    %v1236 = vadd.f32 %v1232, %v1235
    %vm1237 = vweird.f32 %v794
    %vm1238 = vweird.f32 %v1232
    %vm1239 = vmor %vm1237, %vm1238
    %v1240 = vsel %vm1239, %v1232, %v1236
    %v1241 = vand.u32 2147483647, %v794
    %vm1242 = vcmp.eq.f32.partialorder %v1241, 8.507059e+37
    %v1243 = vand.u32 %v794, 2147483648
    %v1244 = vor.u32 1.1754944e-38, %v1243
    %v1245 = vsel %vm1242, %v1244, %v1240
    %v1246 = vmul.f32 1.0, %v1245
    %v1247 = vrcp.pop %v795
    %v1248 = vmul.f32 %v795, %v1247
    %v1249 = vsub.f32 1.0, %v1248
    %v1250 = vmul.f32 %v1247, %v1249
    %v1251 = vadd.f32 %v1247, %v1250
    %vm1252 = vweird.f32 %v795
    %vm1253 = vweird.f32 %v1247
    %vm1254 = vmor %vm1252, %vm1253
    %v1255 = vsel %vm1254, %v1247, %v1251
    %v1256 = vand.u32 2147483647, %v795
    %vm1257 = vcmp.eq.f32.partialorder %v1256, 8.507059e+37
    %v1258 = vand.u32 %v795, 2147483648
    %v1259 = vor.u32 1.1754944e-38, %v1258
    %v1260 = vsel %vm1257, %v1259, %v1255
    %v1261 = vmul.f32 1.0, %v1260
    %v1262 = vrcp.pop %v796
    %v1263 = vmul.f32 %v796, %v1262
    %v1264 = vsub.f32 1.0, %v1263
    %v1265 = vmul.f32 %v1262, %v1264
    %v1266 = vadd.f32 %v1262, %v1265
    %vm1267 = vweird.f32 %v796
    %vm1268 = vweird.f32 %v1262
    %vm1269 = vmor %vm1267, %vm1268
    %v1270 = vsel %vm1269, %v1262, %v1266
    %v1271 = vand.u32 2147483647, %v796
    %vm1272 = vcmp.eq.f32.partialorder %v1271, 8.507059e+37
    %v1273 = vand.u32 %v796, 2147483648
    %v1274 = vor.u32 1.1754944e-38, %v1273
    %v1275 = vsel %vm1272, %v1274, %v1270
    %v1276 = vmul.f32 1.0, %v1275
    %1277 = vst [vmem:[#allocation2] sm:$0xff] %v811
    %1278 = vst [vmem:[#allocation2 + $0x8] sm:$0xff] %v826
    %1279 = vst [vmem:[#allocation2 + $0x10] sm:$0xff] %v841
    %1280 = vst [vmem:[#allocation2 + $0x18] sm:$0xff] %v856
    %1281 = vst [vmem:[#allocation2 + $0x20] sm:$0xff] %v871
    %1282 = vst [vmem:[#allocation2 + $0x28] sm:$0xff] %v886
    %1283 = vst [vmem:[#allocation2 + $0x30] sm:$0xff] %v901
    %1284 = vst [vmem:[#allocation2 + $0x38] sm:$0xff] %v916
    %1285 = vst [vmem:[#allocation2 + $0x40] sm:$0xff] %v931
    %1286 = vst [vmem:[#allocation2 + $0x48] sm:$0xff] %v946
    %1287 = vst [vmem:[#allocation2 + $0x50] sm:$0xff] %v961
    %1288 = vst [vmem:[#allocation2 + $0x58] sm:$0xff] %v976
    %1289 = vst [vmem:[#allocation2 + $0x60] sm:$0xff] %v991
    %1290 = vst [vmem:[#allocation2 + $0x68] sm:$0xff] %v1006
    %1291 = vst [vmem:[#allocation2 + $0x70] sm:$0xff] %v1021
    %1292 = vst [vmem:[#allocation2 + $0x78] sm:$0xff] %v1036
    %1293 = vst [vmem:[#allocation2 + $0x80] sm:$0xff] %v1051
    %1294 = vst [vmem:[#allocation2 + $0x88] sm:$0xff] %v1066
    %1295 = vst [vmem:[#allocation2 + $0x90] sm:$0xff] %v1081
    %1296 = vst [vmem:[#allocation2 + $0x98] sm:$0xff] %v1096
    %1297 = vst [vmem:[#allocation2 + $0xa0] sm:$0xff] %v1111
    %1298 = vst [vmem:[#allocation2 + $0xa8] sm:$0xff] %v1126
    %1299 = vst [vmem:[#allocation2 + $0xb0] sm:$0xff] %v1141
    %1300 = vst [vmem:[#allocation2 + $0xb8] sm:$0xff] %v1156
    %1301 = vst [vmem:[#allocation2 + $0xc0] sm:$0xff] %v1171
    %1302 = vst [vmem:[#allocation2 + $0xc8] sm:$0xff] %v1186
    %1303 = vst [vmem:[#allocation2 + $0xd0] sm:$0xff] %v1201
    %1304 = vst [vmem:[#allocation2 + $0xd8] sm:$0xff] %v1216
    %1305 = vst [vmem:[#allocation2 + $0xe0] sm:$0xff] %v1231
    %1306 = vst [vmem:[#allocation2 + $0xe8] sm:$0xff] %v1246
    %1307 = vst [vmem:[#allocation2 + $0xf0] sm:$0xff] %v1261
    %1308 = vst [vmem:[#allocation2 + $0xf8] sm:$0xff] %v1276
    // Predicated region
    $region30: #{scores_fn.1} parent=1 // pred_check
      _
    $region31: #{scores_fn.1} parent=1 // pred_check_branch
      %1310 = sbr.rel (0) target = $region33
    $region32: #{scores_fn.1} parent=1 // pred_region
      %1312 = vsyncadd [#allocation3], 0
      %s1313 = sshll.u32 [#allocation2], 4
      %s1314 = int_to_ptr.vmem [resolvable:$true] %s1313
      %s1315 = sshll.u32 %s7, 4
      %s1316 = int_to_ptr.hbm [resolvable:$true] %s1315
      %1321 = dma.vmem_to_hbm [thread:$0]  %s1314, 4096, %s1316, [#allocation3], 256, 256, 16
    $region33: #{scores_fn.1} parent=1 // pred_fallthru
      _
    // Predicated region
    $region34: #{scores_fn.1} parent=1 // pred_check
      _
    $region35: #{scores_fn.1} parent=1 // pred_check_branch
      %1323 = sbr.rel (0) target = $region37
    $region36: #{scores_fn.1} parent=1 // pred_region
      %1325 = dma.done [#allocation3], 4096
    $region37: #{scores_fn.1} parent=1 // pred_fallthru
      _
    %1326 = vsyncpa [#allocation3], 1

</llo_original>
